<compile_context>
chip_gen: v5e
topology: v5e:2x2
jax: 0.10.0
libtpu: 0.0.40
codegen_flags: <defaults>
</compile_context>

<pallas_src>
import functools

import jax
import jax.numpy as jnp
from jax.experimental import pallas as pl
from jax.experimental.pallas import tpu as pltpu


def _kl_div_kernel(inv_t_ref, o1_ref, o2_ref, out_ref, *, batch, block_rows):
    i = pl.program_id(0)
    inv_t = inv_t_ref[0, 0]

    # Promote to f32 and apply 1/T as a multiply (no full-width f32 divide).
    x1 = o1_ref[...].astype(jnp.float32) * inv_t
    x2 = o2_ref[...].astype(jnp.float32) * inv_t

    # Stable log-sum-exp pieces; exactly two full-width exps per element.
    m1 = jnp.max(x1, axis=1, keepdims=True)
    s1 = jnp.sum(jnp.exp(x1 - m1), axis=1, keepdims=True)

    m2 = jnp.max(x2, axis=1, keepdims=True)
    e2 = jnp.exp(x2 - m2)
    s2 = jnp.sum(e2, axis=1, keepdims=True)

    # log_p2 - log_p1 == (x2 - x1) + (m1 - m2) + (log s1 - log s2)
    # sum_j p2 * (log_p2 - log_p1)
    #   == sum_j e2*(x2 - x1) / s2 + (m1 - m2) + (log s1 - log s2)
    # (sum_j p2 == 1), so no full-width log_p1 / log_p2 / diff arrays.
    row_dot = jnp.sum(e2 * (x2 - x1), axis=1, keepdims=True)
    row_kl = row_dot / s2 + (m1 - m2) + (jnp.log(s1) - jnp.log(s2))

    # Ragged last block: drop out-of-bounds rows with a SELECT (where), never
    # a 0/1 multiply (garbage rows may be NaN/Inf and 0*NaN = NaN).
    rows_left = batch - i * block_rows
    row_idx = jax.lax.broadcasted_iota(jnp.int32, row_kl.shape, 0)
    row_kl = jnp.where(row_idx < rows_left, row_kl, 0.0)

    # Un-normalized partial sum for this batch tile; wrapper divides by B.
    out_ref[0, 0] = jnp.sum(row_kl)


def _pick_block_rows(B, C, max_block_elems=256 * 1024):
    """Rows per tile: ~1 MiB f32 per input tile, multiple of 8, and >= 2 grid
    steps (when B allows) so the 'parallel' axis can use both v7x cores."""
    if B <= 8:
        return B                       # full-array block (always legal)
    tb = (max_block_elems // max(C, 1)) // 8 * 8
    tb = max(8, min(tb, 512))
    if tb * 2 > B:                     # guarantee at least 2 grid steps
        tb = max(8, (B // 2) // 8 * 8)
    return tb


def _clamp_block_rows(tb, B):
    if B <= 8 or tb >= B:
        return B
    return max(8, (tb // 8) * 8)       # sublane (8) granularity


def kl_div_loss_custom(output_1, output_2, temperature=1.0, block_rows=None):
    """Pallas equivalent of KLDivLossCustom.forward (reduction='batchmean')."""
    assert output_1.shape == output_2.shape
    assert output_1.ndim == 2
    B, C = output_1.shape

    if block_rows is None:
        TB = _pick_block_rows(B, C)
    else:
        TB = _clamp_block_rows(int(block_rows), B)
    G = pl.cdiv(B, TB)                 # no padding: last block masked in-kernel

    # 1/T as data (SMEM scalar) -> one compiled kernel for any temperature.
    inv_t = (1.0 / jnp.asarray(temperature, jnp.float32)).reshape(1, 1)

    kernel = functools.partial(_kl_div_kernel, batch=B, block_rows=TB)

    itemsize = jnp.dtype(output_1.dtype).itemsize
    cost = pl.CostEstimate(
        flops=9 * B * C,
        transcendentals=2 * B * C,
        bytes_accessed=2 * B * C * itemsize + G * 4 + 4,
    )

    partials = pl.pallas_call(
        kernel,
        out_shape=jax.ShapeDtypeStruct((G, 1), jnp.float32),
        grid_spec=pltpu.PrefetchScalarGridSpec(
            num_scalar_prefetch=0,
            grid=(G,),
            in_specs=[
                pl.BlockSpec((1, 1), lambda i: (0, 0),
                             memory_space=pltpu.SMEM),
                pl.BlockSpec((TB, C), lambda i: (i, 0)),
                pl.BlockSpec((TB, C), lambda i: (i, 0)),
            ],
            out_specs=pl.BlockSpec((1, 1), lambda i: (i, 0),
                                   memory_space=pltpu.SMEM),
        ),
        compiler_params=pltpu.CompilerParams(
            dimension_semantics=("parallel",),
        ),
        cost_estimate=cost,
    )(inv_t, output_1, output_2)

    # batchmean: divide by the ORIGINAL batch size.
    return jnp.sum(partials) / jnp.float32(B)


def _reference(output_1, output_2, temperature=1.0):
    # Pure-JAX reference (mirrors the PyTorch module exactly).
    log_p1 = jax.nn.log_softmax(output_1 / temperature, axis=1)
    log_p2 = jax.nn.log_softmax(output_2 / temperature, axis=1)
    p2 = jnp.exp(log_p2)
    return jnp.sum(p2 * (log_p2 - log_p1)) / output_1.shape[0]


if __name__ == "__main__":
    key = jax.random.PRNGKey(0)
    k1, k2, k3, k4, k5, k6 = jax.random.split(key, 6)

    # Case 1: single-block path (B=8, C=32), temperature != 1.
    a1 = jax.random.normal(k1, (8, 32), dtype=jnp.float32)
    b1 = jax.random.normal(k2, (8, 32), dtype=jnp.float32)
    got1 = jax.block_until_ready(kl_div_loss_custom(a1, b1, temperature=2.0))
    ref1 = _reference(a1, b1, 2.0)
    assert jnp.allclose(got1, ref1, rtol=1e-4, atol=1e-5), (got1, ref1)

    # Case 2: tiled path with a ragged last block (B=40, TB=16 -> grid=3,
    # last block has only 8 valid rows -> exercises the in-kernel mask).
    a2 = jax.random.normal(k3, (40, 128), dtype=jnp.float32)
    b2 = jax.random.normal(k4, (40, 128), dtype=jnp.float32)
    got2 = jax.block_until_ready(
        kl_div_loss_custom(a2, b2, temperature=0.5, block_rows=16))
    ref2 = _reference(a2, b2, 0.5)
    assert jnp.allclose(got2, ref2, rtol=1e-4, atol=1e-5), (got2, ref2)

    # Case 3: bf16 logits (kernel upcasts; softmax math stays f32).
    a3 = jax.random.normal(k5, (24, 64), dtype=jnp.float32).astype(jnp.bfloat16)
    b3 = jax.random.normal(k6, (24, 64), dtype=jnp.float32).astype(jnp.bfloat16)
    got3 = jax.block_until_ready(kl_div_loss_custom(a3, b3, temperature=1.0))
    ref3 = _reference(a3.astype(jnp.float32), b3.astype(jnp.float32), 1.0)
    assert jnp.allclose(got3, ref3, rtol=1e-4, atol=1e-5), (got3, ref3)

    print("KERNEL_OK")
</pallas_src>

<mosaic_0001>
module attributes {stable_mosaic.version = 11 : i64} {
  func.func @_kl_div_kernel(%arg0: i32, %arg1: memref<1x1xf32, #tpu.memory_space<smem>>, %arg2: memref<8x32xf32, #tpu.memory_space<vmem>>, %arg3: memref<8x32xf32, #tpu.memory_space<vmem>>, %arg4: memref<1x1xf32, #tpu.memory_space<smem>>) attributes {dimension_semantics = [#tpu.dimension_semantics<parallel>], iteration_bounds = array<i64: 1>, scalar_prefetch = 0 : i64, scratch_operands = 0 : i64, tpu.core_type = #tpu.core_type<tc>, window_params = [{transform_indices = @transform_0, window_bounds = array<i64: 1, 1>}, {transform_indices = @transform_1, window_bounds = array<i64: 8, 32>}, {transform_indices = @transform_2, window_bounds = array<i64: 8, 32>}, {transform_indices = @transform_3, window_bounds = array<i64: 1, 1>}]} {
    %c0 = arith.constant 0 : index
    %c0_0 = arith.constant 0 : index
    %0 = memref.load %arg1[%c0, %c0_0] : memref<1x1xf32, #tpu.memory_space<smem>>
    %c0_1 = arith.constant 0 : index
    %c0_2 = arith.constant 0 : index
    %1 = vector.load %arg2[%c0_1, %c0_2] : memref<8x32xf32, #tpu.memory_space<vmem>>, vector<8x32xf32>
    %2 = vector.broadcast %0 : f32 to vector<8x32xf32>
    %3 = arith.mulf %1, %2 : vector<8x32xf32>
    %c0_3 = arith.constant 0 : index
    %c0_4 = arith.constant 0 : index
    %4 = vector.load %arg3[%c0_3, %c0_4] : memref<8x32xf32, #tpu.memory_space<vmem>>, vector<8x32xf32>
    %5 = vector.broadcast %0 : f32 to vector<8x32xf32>
    %6 = arith.mulf %4, %5 : vector<8x32xf32>
    %cst = arith.constant dense<0xFF800000> : vector<8xf32>
    %7 = vector.multi_reduction <maximumf>, %3, %cst [1] : vector<8x32xf32> to vector<8xf32>
    %8 = vector.shape_cast %7 : vector<8xf32> to vector<8x1xf32>
    %9 = vector.broadcast %8 : vector<8x1xf32> to vector<8x32xf32>
    %10 = arith.subf %3, %9 : vector<8x32xf32>
    %11 = math.exp %10 : vector<8x32xf32>
    %cst_5 = arith.constant dense<0.000000e+00> : vector<8xf32>
    %12 = vector.multi_reduction <add>, %11, %cst_5 [1] : vector<8x32xf32> to vector<8xf32>
    %13 = vector.shape_cast %12 : vector<8xf32> to vector<8x1xf32>
    %cst_6 = arith.constant dense<0xFF800000> : vector<8xf32>
    %14 = vector.multi_reduction <maximumf>, %6, %cst_6 [1] : vector<8x32xf32> to vector<8xf32>
    %15 = vector.shape_cast %14 : vector<8xf32> to vector<8x1xf32>
    %16 = vector.broadcast %15 : vector<8x1xf32> to vector<8x32xf32>
    %17 = arith.subf %6, %16 : vector<8x32xf32>
    %18 = math.exp %17 : vector<8x32xf32>
    %cst_7 = arith.constant dense<0.000000e+00> : vector<8xf32>
    %19 = vector.multi_reduction <add>, %18, %cst_7 [1] : vector<8x32xf32> to vector<8xf32>
    %20 = vector.shape_cast %19 : vector<8xf32> to vector<8x1xf32>
    %21 = arith.subf %6, %3 : vector<8x32xf32>
    %22 = arith.mulf %18, %21 : vector<8x32xf32>
    %cst_8 = arith.constant dense<0.000000e+00> : vector<8xf32>
    %23 = vector.multi_reduction <add>, %22, %cst_8 [1] : vector<8x32xf32> to vector<8xf32>
    %24 = vector.shape_cast %23 : vector<8xf32> to vector<8x1xf32>
    %25 = arith.divf %24, %20 : vector<8x1xf32>
    %26 = arith.subf %8, %15 : vector<8x1xf32>
    %27 = arith.addf %25, %26 : vector<8x1xf32>
    %28 = math.log %13 : vector<8x1xf32>
    %29 = math.log %20 : vector<8x1xf32>
    %30 = arith.subf %28, %29 : vector<8x1xf32>
    %31 = arith.addf %27, %30 : vector<8x1xf32>
    %c8_i32 = arith.constant 8 : i32
    %32 = arith.muli %arg0, %c8_i32 : i32
    %c8_i32_9 = arith.constant 8 : i32
    %33 = arith.subi %c8_i32_9, %32 : i32
    %34 = tpu.iota {dimensions = array<i32: 0>} : vector<8x1xi32>
    %35 = vector.broadcast %33 : i32 to vector<8x1xi32>
    %36 = arith.cmpi slt, %34, %35 : vector<8x1xi32>
    %cst_10 = arith.constant 0.000000e+00 : f32
    %37 = vector.broadcast %cst_10 : f32 to vector<8x1xf32>
    %38 = arith.select %36, %31, %37 : vector<8x1xi1>, vector<8x1xf32>
    %39 = vector.shape_cast %38 : vector<8x1xf32> to vector<1x8x1xf32>
    %cst_11 = arith.constant dense<0.000000e+00> : vector<1xf32>
    %40 = vector.multi_reduction <add>, %39, %cst_11 [1, 2] : vector<1x8x1xf32> to vector<1xf32>
    %41 = vector.shape_cast %40 : vector<1xf32> to vector<1x1x1xf32>
    %42 = vector.extract %41[0, 0, 0] : f32 from vector<1x1x1xf32>
    %c0_12 = arith.constant 0 : index
    %c0_13 = arith.constant 0 : index
    %43 = memref.load %arg4[%c0_12, %c0_13] : memref<1x1xf32, #tpu.memory_space<smem>>
    memref.store %42, %arg4[%c0_12, %c0_13] : memref<1x1xf32, #tpu.memory_space<smem>>
    return
  }
  func.func @transform_0(%arg0: i32) -> (i32, i32) {
    %c0_i32 = arith.constant 0 : i32
    %c0_i32_0 = arith.constant 0 : i32
    %c0_i32_1 = arith.constant 0 : i32
    return %c0_i32, %c0_i32_0 : i32, i32
  }
  func.func @transform_1(%arg0: i32) -> (i32, i32) {
    %c0_i32 = arith.constant 0 : i32
    %c0_i32_0 = arith.constant 0 : i32
    return %arg0, %c0_i32 : i32, i32
  }
  func.func @transform_2(%arg0: i32) -> (i32, i32) {
    %c0_i32 = arith.constant 0 : i32
    %c0_i32_0 = arith.constant 0 : i32
    return %arg0, %c0_i32 : i32, i32
  }
  func.func @transform_3(%arg0: i32) -> (i32, i32) {
    %c0_i32 = arith.constant 0 : i32
    %c0_i32_0 = arith.constant 0 : i32
    return %arg0, %c0_i32 : i32, i32
  }
}

</mosaic_0001>

<llo_original>
// kernel: tpu_custom_call.1
$region0: #{tpu_custom_call.1}
  #allocation0 [shape = 'u32[]', space=smem, size = 0x4, offset = 0x4, fixed_abs, tag = 'smem constant byte address 0x4 - core index']
  #allocation1 [shape = 'u32[72,128]{1,0:T(1,128)}', space=vmem, size = 0x9000, scoped, tag = 'internal scratch']
  #allocation2 [shape = 'f32[1,1]{1,0:T(1,128)S(6)}', space=smem, size = 0x200, scoped, tag = 'scoped memory for tpu_custom_call.1']
  %s0 = inlined_call_operand.<no memory space> [shape: f32[1,1], index: 0, kind: input, shape index: {}]
  %s1 = inlined_call_operand.hbm [shape: f32[8,32], index: 1, kind: input, shape index: {}]
  %s2 = inlined_call_operand.hbm [shape: f32[8,32], index: 2, kind: input, shape index: {}]
  %s3 = inlined_call_operand.hbm [shape: f32[1,1], index: 3, kind: output, shape index: {}]
  %s4 = sld [smem:[#allocation0]]
  $region30: #{tpu_custom_call.1} parent=0
    _
  %s6 = ssub.s32 1, %s4
  %s7 = scalar_select 0, %s6, %s4
  %8 = sst [smem:[#allocation2]] %s0
  $region1: #{tpu_custom_call.1} parent=0
    #allocation3 [shape = 'u8[4096]{0}', space=vmem, size = 0x1000, scoped, tag = 'input window, operand 1, single buffered']
    #allocation4 [shape = 's32[1]{0}', space=sflag, size = 0x4, scoped, tag = 'scoped memory for tpu_custom_call.1']
    #allocation5 [shape = 's32[1]{0}', space=sflag, size = 0x4, scoped, tag = 'scoped memory for tpu_custom_call.1']
    #allocation6 [shape = 'u8[4096]{0}', space=vmem, size = 0x1000, scoped, tag = 'input window, operand 2, single buffered']
    #allocation7 [shape = 's32[1]{0}', space=sflag, size = 0x4, scoped, tag = 'scoped memory for tpu_custom_call.1']
    #allocation8 [shape = 'u8[512]{0}', space=smem, size = 0x200, scoped, tag = 'output window, operand 0, single buffered']
    %9 = vsyncpa [#allocation4], 0
    %10 = vsyncpa [#allocation7], 0
    %11 = vsyncpa [#allocation5], 0
    // Predicated region
    $region2: #{tpu_custom_call.1} parent=1 // pred_check
      _
    $region3: #{tpu_custom_call.1} parent=1 // pred_check_branch
      %13 = sbr.rel (0) target = $region5
    $region4: #{tpu_custom_call.1} parent=1 // pred_region
      _
    $region5: #{tpu_custom_call.1} parent=1 // pred_fallthru
      _
    // Predicated region
    $region6: #{tpu_custom_call.1} parent=1 // pred_check
      _
    $region7: #{tpu_custom_call.1} parent=1 // pred_check_branch
      %15 = sbr.rel (0) target = $region9
    $region8: #{tpu_custom_call.1} parent=1 // pred_region
      %17 = vsyncadd [#allocation4], 0
      %s19 = sshll.u32 %s1, 4
      %s20 = int_to_ptr.hbm [resolvable:$true] %s19
      %s21 = sshll.u32 [#allocation3], 4
      %s22 = int_to_ptr.vmem [resolvable:$true] %s21
      %24 = dma.hbm_to_vmem [thread:$0]  %s20, 128, %s22, [#allocation4]
    $region9: #{tpu_custom_call.1} parent=1 // pred_fallthru
      _
    // Predicated region
    $region10: #{tpu_custom_call.1} parent=1 // pred_check
      _
    $region11: #{tpu_custom_call.1} parent=1 // pred_check_branch
      %26 = sbr.rel (0) target = $region13
    $region12: #{tpu_custom_call.1} parent=1 // pred_region
      %28 = vsyncadd [#allocation7], 0
      %s30 = sshll.u32 %s2, 4
      %s31 = int_to_ptr.hbm [resolvable:$true] %s30
      %s32 = sshll.u32 [#allocation6], 4
      %s33 = int_to_ptr.vmem [resolvable:$true] %s32
      %35 = dma.hbm_to_vmem [thread:$0]  %s31, 128, %s33, [#allocation7]
    $region13: #{tpu_custom_call.1} parent=1 // pred_fallthru
      _
    // Predicated region
    $region14: #{tpu_custom_call.1} parent=1 // pred_check
      _
    $region15: #{tpu_custom_call.1} parent=1 // pred_check_branch
      %37 = sbr.rel (0) target = $region17
    $region16: #{tpu_custom_call.1} parent=1 // pred_region
      %39 = dma.done [#allocation4], 128
    $region17: #{tpu_custom_call.1} parent=1 // pred_fallthru
      _
    // Predicated region
    $region18: #{tpu_custom_call.1} parent=1 // pred_check
      _
    $region19: #{tpu_custom_call.1} parent=1 // pred_check_branch
      %41 = sbr.rel (0) target = $region21
    $region20: #{tpu_custom_call.1} parent=1 // pred_region
      %43 = dma.done [#allocation7], 128
    $region21: #{tpu_custom_call.1} parent=1 // pred_fallthru
      _
    %s44 = sld [smem:[#allocation2]]
    %v45 = vld [vmem:[#allocation3] sm:$0xff]
    %v46 = vstv %s44
    %v47 = vmul.f32 %v45, %v46
    %v48 = vld [vmem:[#allocation6] sm:$0xff]
    %v49 = vmul.f32 %v48, %v46
    %vm50 = vcmask 261120
    %v51 = vsel %vm50, %v47, -inf
    %52 = vmax.xlane.f32.xlu0 %v51
    %v53 = vpop.xlane.xlu0 %52
    %v54 = vsub.f32 %v47, %v53
    %v55 = vmul.f32 %v54, 1.442695
    %v56 = vpow.pop %v55
    %v57 = vsel %vm50, %v56, 0.0
    %58 = vadd.xlane.f32.xlu0 %v57
    %v59 = vpop.xlane.xlu0 %58
    %v60 = vsel %vm50, %v49, -inf
    %61 = vmax.xlane.f32.xlu0 %v60
    %v62 = vpop.xlane.xlu0 %61
    %v63 = vsub.f32 %v49, %v62
    %v64 = vmul.f32 %v63, 1.442695
    %v65 = vpow.pop %v64
    %v66 = vsel %vm50, %v65, 0.0
    %67 = vadd.xlane.f32.xlu0 %v66
    %v68 = vpop.xlane.xlu0 %67
    %v69 = vsub.f32 %v49, %v47
    %v70 = vmul.f32 %v65, %v69
    %v71 = vsel %vm50, %v70, 0.0
    %72 = vadd.xlane.f32.xlu0 %v71
    %v73 = vpop.xlane.xlu0 %72
    %v74 = vrcp.pop %v68
    %v75 = vmul.f32 %v68, %v74
    %v76 = vsub.f32 1.0, %v75
    %v77 = vmul.f32 %v74, %v76
    %v78 = vadd.f32 %v74, %v77
    %vm79 = vweird.f32 %v68
    %vm80 = vweird.f32 %v74
    %vm81 = vmor %vm79, %vm80
    %v82 = vsel %vm81, %v74, %v78
    %v83 = vand.u32 2147483647, %v68
    %vm84 = vcmp.eq.f32.partialorder %v83, 8.507059e+37
    %v85 = vand.u32 %v68, 2147483648
    %v86 = vor.u32 1.1754944e-38, %v85
    %v87 = vsel %vm84, %v86, %v82
    %v88 = vmul.f32 %v73, %v87
    %v89 = vsub.f32 %v53, %v62
    %v90 = vadd.f32 %v88, %v89
    %v91 = vlog2.pop %v59
    %v92 = vmul.f32 %v91, 0.6931472
    %v93 = vlog2.pop %v68
    %v94 = vmul.f32 %v93, 0.6931472
    %v95 = vsub.f32 %v92, %v94
    %v96 = vadd.f32 %v90, %v95
    %s97 = smul.u32 0, 8
    %s98 = ssub.s32 8, %s97
    %v99 = vlaneseq
    %v100 = vshrl.u32 %v99, 7
    %v101 = vstv %s98
    %vm102 = vcmp.lt.s32.totalorder %v100, %v101
    %v103 = vsel %vm102, %v96, 0.0
    %vm104 = vcmask 7168
    %v105 = vsel %vm104, %v103, 0.0
    %106 = vadd.xlane.f32.xlu0 %v105
    %v107 = vpop.xlane.xlu0 %106
    %v108 = vrot.slane %v107, 4
    %v109 = vadd.f32 %v107, %v108
    %v110 = vrot.slane %v109, 2
    %v111 = vadd.f32 %v109, %v110
    %v112 = vrot.slane %v111, 1
    %v113 = vadd.f32 %v111, %v112
    %s114 = vtos %v113
    %s115 = scalar_lea.smem [#allocation8], 0
    %116 = sst [smem:[%s115]] %s114
    // Predicated region
    $region22: #{tpu_custom_call.1} parent=1 // pred_check
      _
    $region23: #{tpu_custom_call.1} parent=1 // pred_check_branch
      %118 = sbr.rel (0) target = $region25
    $region24: #{tpu_custom_call.1} parent=1 // pred_region
      %120 = vsyncadd [#allocation5], 0
      %s122 = sshll.u32 %s3, 4
      %s123 = int_to_ptr.hbm [resolvable:$true] %s122
      %125 = dma.smem_to_hbm [#allocation8], 16, %s123, [#allocation5]
    $region25: #{tpu_custom_call.1} parent=1 // pred_fallthru
      _
    // Predicated region
    $region26: #{tpu_custom_call.1} parent=1 // pred_check
      _
    $region27: #{tpu_custom_call.1} parent=1 // pred_check_branch
      %127 = sbr.rel (0) target = $region29
    $region28: #{tpu_custom_call.1} parent=1 // pred_region
      %129 = dma.done [#allocation5], 16
    $region29: #{tpu_custom_call.1} parent=1 // pred_fallthru
      _
    %130 = sfence
    %131 = vsyncpa [#allocation4], 1
    %132 = vsyncpa [#allocation7], 1
    %133 = vsyncpa [#allocation5], 1

</llo_original>
